<compile_context>
chip_gen: v7x
topology: tpu7x:2x2x1
jax: 0.10.0
libtpu: 0.0.40
codegen_flags: <defaults>
</compile_context>

<pallas_src>
import functools

import jax
import jax.numpy as jnp
from jax.experimental import pallas as pl
from jax.experimental.pallas import tpu as pltpu


def _round_up(x, m):
    return ((x + m - 1) // m) * m


def _focal_modulator(w, gamma):
    """(1 - p_t)**gamma with w = 1 - p_t >= 0.

    Small integer gamma -> repeated VPU multiplies (no transcendentals, no NaN
    risk); otherwise fall back to pow on the clamped (>= 0) base.
    """
    g = float(gamma)
    if g.is_integer() and 0 <= g <= 16:
        gi = int(g)
        if gi == 0:
            return jnp.ones_like(w)
        acc = w
        for _ in range(gi - 1):
            acc = acc * w
        return acc
    return jnp.power(w, jnp.float32(g))


def _focal_loss_body(logits_ref, targets_ref, out_ref, acc_ref, *, gamma,
                     rows_in_last_tile, needs_mask, alpha_ref=None):
    i = pl.program_id(0)
    last = pl.num_programs(0) - 1

    @pl.when(i == 0)
    def _init():
        acc_ref[...] = jnp.zeros_like(acc_ref)

    # Native-dtype DMA; cast to f32 on the VPU after the load.
    logits = logits_ref[...].astype(jnp.float32)          # (TN, C)
    targets = targets_ref[...]                            # (TN, 1) int32
    tn, c = logits.shape

    class_ids = jax.lax.broadcasted_iota(jnp.int32, (tn, c), 1)
    tgt_mask = class_ids == targets                       # (TN, C) bool

    # Target logit gathered directly from the raw logits (no f32 one-hot, and
    # the shifted slab does not need to stay live for the gather).
    logit_t = jnp.sum(jnp.where(tgt_mask, logits, 0.0),
                      axis=-1, keepdims=True)             # (TN, 1)

    # Numerically-stable softmax pieces.
    row_max = jnp.max(logits, axis=-1, keepdims=True)     # (TN, 1)
    exp_shifted = jnp.exp(logits - row_max)               # (TN, C)
    sum_exp = jnp.sum(exp_shifted, axis=-1, keepdims=True)
    exp_t = jnp.sum(jnp.where(tgt_mask, exp_shifted, 0.0),
                    axis=-1, keepdims=True)               # (TN, 1)

    ce = jnp.log(sum_exp) - (logit_t - row_max)           # per-sample CE
    ce = jnp.maximum(ce, 0.0)                             # guard FP round-off

    # p_t reuses the softmax numerator already in registers: no exp(-ce).
    p_t = exp_t * pl.reciprocal(sum_exp, approx=True)
    w = jnp.maximum(1.0 - p_t, 0.0)                       # approx recip may give p_t > 1
    focal = _focal_modulator(w, gamma) * ce               # (TN, 1)

    if alpha_ref is not None:
        focal = alpha_ref[...].astype(jnp.float32) * focal

    if needs_mask:
        # Only the last tile can contain padded rows; interior tiles skip the
        # iota + compare + select entirely.
        @pl.when(i == last)
        def _acc_masked():
            rows = jax.lax.broadcasted_iota(jnp.int32, (tn, 1), 0)
            acc_ref[...] += jnp.where(rows < rows_in_last_tile, focal, 0.0)

        @pl.when(i != last)
        def _acc_full():
            acc_ref[...] += focal
    else:
        acc_ref[...] += focal

    # Deferred reduction: one cross-lane sum + one (1, 1) store per kernel.
    @pl.when(i == last)
    def _finalize():
        out_ref[...] = jnp.sum(acc_ref[...]).reshape(1, 1)


def _kernel_no_alpha(logits_ref, targets_ref, out_ref, acc_ref, **kw):
    _focal_loss_body(logits_ref, targets_ref, out_ref, acc_ref,
                     alpha_ref=None, **kw)


def _kernel_with_alpha(logits_ref, targets_ref, alpha_ref, out_ref, acc_ref,
                       **kw):
    _focal_loss_body(logits_ref, targets_ref, out_ref, acc_ref,
                     alpha_ref=alpha_ref, **kw)


def focal_loss(logits, targets, gamma=3, alpha=None, *, tile_rows=512,
               vmem_budget_bytes=12 * 1024 * 1024):
    """Pallas-TPU focal loss (mean over the batch).

    logits : (N, C) float array of unnormalized class scores (any float dtype)
    targets: (N,)   int array of class indices
    alpha  : optional (C,) float array of per-class weights
    returns: scalar float32 mean focal loss
    """
    n, c = logits.shape
    targets = targets.astype(jnp.int32)
    targets2d = targets.reshape(n, 1)

    # ---- tile sizing (VMEM-lane-padding aware) -----------------------------
    # Per buffered row: logits padded to round_up(C, 128) lanes, plus the
    # (TN, 1) int32 targets tile and optional (TN, 1) f32 alpha_t tile, both
    # padded to 128 lanes (512 B/row each). Inputs are double-buffered; the
    # (TN, 1) f32 scratch accumulator is single-buffered.
    padded_c = _round_up(c, 128)
    logit_row_bytes = padded_c * jnp.dtype(logits.dtype).itemsize
    tgt_row_bytes = 128 * 4
    alpha_row_bytes = 128 * 4 if alpha is not None else 0
    bytes_per_row = (2 * (logit_row_bytes + tgt_row_bytes + alpha_row_bytes)
                     + 128 * 4)
    rows_by_vmem = max(8, (vmem_budget_bytes // max(bytes_per_row, 1)) // 8 * 8)
    tn = max(8, min(tile_rows, rows_by_vmem, _round_up(n, 8)))
    num_tiles = pl.cdiv(n, tn)
    rows_in_last = n - (num_tiles - 1) * tn
    needs_mask = rows_in_last != tn

    logits_spec = pl.BlockSpec((tn, c), lambda i: (i, 0))
    col_spec = pl.BlockSpec((tn, 1), lambda i: (i, 0))
    out_spec = pl.BlockSpec((1, 1), lambda i: (0, 0))
    out_shape = jax.ShapeDtypeStruct((1, 1), jnp.float32)

    static = dict(gamma=gamma, rows_in_last_tile=rows_in_last,
                  needs_mask=needs_mask)

    if alpha is None:
        kernel = functools.partial(_kernel_no_alpha, **static)
        in_specs = [logits_spec, col_spec]
        args = (logits, targets2d)
    else:
        # Per-sample alpha gather done once in the wrapper (cheap XLA gather),
        # streamed as an (N, 1) input instead of an in-kernel (1, C) select.
        alpha_t = jnp.take(jnp.asarray(alpha, jnp.float32), targets, axis=0)
        alpha_t = alpha_t.reshape(n, 1)
        kernel = functools.partial(_kernel_with_alpha, **static)
        in_specs = [logits_spec, col_spec, col_spec]
        args = (logits, targets2d, alpha_t)

    total = pl.pallas_call(
        kernel,
        out_shape=out_shape,
        grid_spec=pltpu.PrefetchScalarGridSpec(
            num_scalar_prefetch=0,
            grid=(num_tiles,),
            in_specs=in_specs,
            out_specs=out_spec,
            scratch_shapes=[pltpu.VMEM((tn, 1), jnp.float32)],
        ),
        compiler_params=pltpu.CompilerParams(
            dimension_semantics=("arbitrary",)),
    )(*args)

    return total[0, 0] / jnp.float32(n)


def focal_loss_ref(logits, targets, gamma=3, alpha=None):
    """Pure-JAX reference mirroring the PyTorch module."""
    logits = logits.astype(jnp.float32)
    lse = jax.scipy.special.logsumexp(logits, axis=-1)
    logit_t = jnp.take_along_axis(logits, targets[:, None], axis=-1)[:, 0]
    ce = lse - logit_t
    p_t = jnp.exp(-ce)
    focal = (1.0 - p_t) ** gamma * ce
    if alpha is not None:
        focal = jnp.asarray(alpha, jnp.float32)[targets] * focal
    return jnp.mean(focal)


if __name__ == "__main__":
    key = jax.random.PRNGKey(0)
    k1, k2, k3, k4 = jax.random.split(key, 4)

    # Default module config: gamma=3, alpha=None, small shapes.
    batch, num_classes = 8, 16
    logits = jax.random.normal(k1, (batch, num_classes), dtype=jnp.float32)
    targets = jax.random.randint(k2, (batch,), 0, num_classes, dtype=jnp.int32)

    loss = jax.block_until_ready(focal_loss(logits, targets, gamma=3, alpha=None))
    ref = focal_loss_ref(logits, targets, gamma=3, alpha=None)
    assert jnp.allclose(loss, ref, rtol=5e-3, atol=1e-6), (loss, ref)

    # Alpha path (per-class weight vector of shape (C,)).
    alpha_vec = jnp.linspace(0.5, 1.5, num_classes, dtype=jnp.float32)
    loss_a = jax.block_until_ready(
        focal_loss(logits, targets, gamma=3, alpha=alpha_vec))
    ref_a = focal_loss_ref(logits, targets, gamma=3, alpha=alpha_vec)
    assert jnp.allclose(loss_a, ref_a, rtol=5e-3, atol=1e-6), (loss_a, ref_a)

    # Larger case exercising tiling and remainder masking (N % TN != 0).
    n2, c2 = 530, 24
    logits2 = jax.random.normal(k3, (n2, c2), dtype=jnp.float32)
    targets2 = jax.random.randint(k4, (n2,), 0, c2, dtype=jnp.int32)
    loss2 = jax.block_until_ready(focal_loss(logits2, targets2, gamma=3))
    ref2 = focal_loss_ref(logits2, targets2, gamma=3)
    assert jnp.allclose(loss2, ref2, rtol=5e-3, atol=1e-6), (loss2, ref2)

    print("KERNEL_OK")
</pallas_src>

<mosaic_0001>
module attributes {stable_mosaic.version = 11 : i64} {
  func.func @_kernel_no_alpha(%arg0: i32, %arg1: memref<8x16xf32, #tpu.memory_space<vmem>>, %arg2: memref<8x1xi32, #tpu.memory_space<vmem>>, %arg3: memref<1x1xf32, #tpu.memory_space<vmem>>, %arg4: memref<8x1xf32, #tpu.memory_space<vmem>>) attributes {dimension_semantics = [#tpu.dimension_semantics<arbitrary>], iteration_bounds = array<i64: 1>, scalar_prefetch = 0 : i64, scratch_operands = 1 : i64, tpu.core_type = #tpu.core_type<tc>, window_params = [{transform_indices = @transform_0, window_bounds = array<i64: 8, 16>}, {transform_indices = @transform_1, window_bounds = array<i64: 8, 1>}, {pipeline_mode = #tpu.pipeline_mode<synchronous>, transform_indices = @transform_2, window_bounds = array<i64: 1, 1>}]} {
    %c0_i32 = arith.constant 0 : i32
    %0 = arith.cmpi eq, %arg0, %c0_i32 : i32
    %1 = arith.extui %0 : i1 to i32
    %c0_i32_0 = arith.constant 0 : i32
    %2 = arith.cmpi ne, %1, %c0_i32_0 : i32
    scf.if %2 {
      %cst_18 = arith.constant 0.000000e+00 : f32
      %43 = vector.broadcast %cst_18 : f32 to vector<8x1xf32>
      %c0_19 = arith.constant 0 : index
      %c0_20 = arith.constant 0 : index
      %44 = vector.load %arg4[%c0_19, %c0_20] : memref<8x1xf32, #tpu.memory_space<vmem>>, vector<8x1xf32>
      tpu.vector_store %arg4[%c0_19, %c0_20], %43 {strides = array<i32>} : memref<8x1xf32, #tpu.memory_space<vmem>>, vector<8x1xf32>,
    } else {
    }
    %c0 = arith.constant 0 : index
    %c0_1 = arith.constant 0 : index
    %3 = vector.load %arg1[%c0, %c0_1] : memref<8x16xf32, #tpu.memory_space<vmem>>, vector<8x16xf32>
    %c0_2 = arith.constant 0 : index
    %c0_3 = arith.constant 0 : index
    %4 = vector.load %arg2[%c0_2, %c0_3] : memref<8x1xi32, #tpu.memory_space<vmem>>, vector<8x1xi32>
    %5 = tpu.iota {dimensions = array<i32: 1>} : vector<8x16xi32>
    %6 = vector.broadcast %4 : vector<8x1xi32> to vector<8x16xi32>
    %7 = arith.cmpi eq, %5, %6 : vector<8x16xi32>
    %cst = arith.constant 0.000000e+00 : f32
    %8 = vector.broadcast %cst : f32 to vector<8x16xf32>
    %9 = arith.select %7, %3, %8 : vector<8x16xi1>, vector<8x16xf32>
    %cst_4 = arith.constant dense<0.000000e+00> : vector<8xf32>
    %10 = vector.multi_reduction <add>, %9, %cst_4 [1] : vector<8x16xf32> to vector<8xf32>
    %11 = vector.shape_cast %10 : vector<8xf32> to vector<8x1xf32>
    %cst_5 = arith.constant dense<0xFF800000> : vector<8xf32>
    %12 = vector.multi_reduction <maximumf>, %3, %cst_5 [1] : vector<8x16xf32> to vector<8xf32>
    %13 = vector.shape_cast %12 : vector<8xf32> to vector<8x1xf32>
    %14 = vector.broadcast %13 : vector<8x1xf32> to vector<8x16xf32>
    %15 = arith.subf %3, %14 : vector<8x16xf32>
    %16 = math.exp %15 : vector<8x16xf32>
    %cst_6 = arith.constant dense<0.000000e+00> : vector<8xf32>
    %17 = vector.multi_reduction <add>, %16, %cst_6 [1] : vector<8x16xf32> to vector<8xf32>
    %18 = vector.shape_cast %17 : vector<8xf32> to vector<8x1xf32>
    %cst_7 = arith.constant 0.000000e+00 : f32
    %19 = vector.broadcast %cst_7 : f32 to vector<8x16xf32>
    %20 = arith.select %7, %16, %19 : vector<8x16xi1>, vector<8x16xf32>
    %cst_8 = arith.constant dense<0.000000e+00> : vector<8xf32>
    %21 = vector.multi_reduction <add>, %20, %cst_8 [1] : vector<8x16xf32> to vector<8xf32>
    %22 = vector.shape_cast %21 : vector<8xf32> to vector<8x1xf32>
    %23 = math.log %18 : vector<8x1xf32>
    %24 = arith.subf %11, %13 : vector<8x1xf32>
    %25 = arith.subf %23, %24 : vector<8x1xf32>
    %cst_9 = arith.constant 0.000000e+00 : f32
    %26 = vector.broadcast %cst_9 : f32 to vector<8x1xf32>
    %27 = arith.maximumf %25, %26 : vector<8x1xf32>
    %28 = tpu.reciprocal %18 {approx = true} : vector<8x1xf32> -> vector<8x1xf32>
    %29 = arith.mulf %22, %28 : vector<8x1xf32>
    %cst_10 = arith.constant 1.000000e+00 : f32
    %30 = vector.broadcast %cst_10 : f32 to vector<8x1xf32>
    %31 = arith.subf %30, %29 : vector<8x1xf32>
    %cst_11 = arith.constant 0.000000e+00 : f32
    %32 = vector.broadcast %cst_11 : f32 to vector<8x1xf32>
    %33 = arith.maximumf %31, %32 : vector<8x1xf32>
    %34 = arith.mulf %33, %33 : vector<8x1xf32>
    %35 = arith.mulf %34, %33 : vector<8x1xf32>
    %36 = arith.mulf %35, %27 : vector<8x1xf32>
    %c0_12 = arith.constant 0 : index
    %c0_13 = arith.constant 0 : index
    %37 = vector.load %arg4[%c0_12, %c0_13] : memref<8x1xf32, #tpu.memory_space<vmem>>, vector<8x1xf32>
    %38 = arith.addf %37, %36 : vector<8x1xf32>
    %c0_14 = arith.constant 0 : index
    %c0_15 = arith.constant 0 : index
    %39 = vector.load %arg4[%c0_14, %c0_15] : memref<8x1xf32, #tpu.memory_space<vmem>>, vector<8x1xf32>
    tpu.vector_store %arg4[%c0_14, %c0_15], %38 {strides = array<i32>} : memref<8x1xf32, #tpu.memory_space<vmem>>, vector<8x1xf32>,
    %c0_i32_16 = arith.constant 0 : i32
    %40 = arith.cmpi eq, %arg0, %c0_i32_16 : i32
    %41 = arith.extui %40 : i1 to i32
    %c0_i32_17 = arith.constant 0 : i32
    %42 = arith.cmpi ne, %41, %c0_i32_17 : i32
    scf.if %42 {
      %c0_18 = arith.constant 0 : index
      %c0_19 = arith.constant 0 : index
      %43 = vector.load %arg4[%c0_18, %c0_19] : memref<8x1xf32, #tpu.memory_space<vmem>>, vector<8x1xf32>
      %44 = vector.shape_cast %43 : vector<8x1xf32> to vector<1x8x1xf32>
      %cst_20 = arith.constant dense<0.000000e+00> : vector<1xf32>
      %45 = vector.multi_reduction <add>, %44, %cst_20 [1, 2] : vector<1x8x1xf32> to vector<1xf32>
      %46 = vector.shape_cast %45 : vector<1xf32> to vector<1x1x1xf32>
      %47 = vector.extract %46[0, 0, 0] : f32 from vector<1x1x1xf32>
      %48 = vector.broadcast %47 : f32 to vector<1x1xf32>
      %c0_21 = arith.constant 0 : index
      %c0_22 = arith.constant 0 : index
      %49 = vector.load %arg3[%c0_21, %c0_22] : memref<1x1xf32, #tpu.memory_space<vmem>>, vector<1x1xf32>
      tpu.vector_store %arg3[%c0_21, %c0_22], %48 {strides = array<i32>} : memref<1x1xf32, #tpu.memory_space<vmem>>, vector<1x1xf32>,
    } else {
    }
    return
  }
  func.func @transform_0(%arg0: i32) -> (i32, i32) {
    %c0_i32 = arith.constant 0 : i32
    %c0_i32_0 = arith.constant 0 : i32
    return %arg0, %c0_i32 : i32, i32
  }
  func.func @transform_1(%arg0: i32) -> (i32, i32) {
    %c0_i32 = arith.constant 0 : i32
    %c0_i32_0 = arith.constant 0 : i32
    return %arg0, %c0_i32 : i32, i32
  }
  func.func @transform_2(%arg0: i32) -> (i32, i32) {
    %c0_i32 = arith.constant 0 : i32
    %c0_i32_0 = arith.constant 0 : i32
    %c0_i32_1 = arith.constant 0 : i32
    return %c0_i32, %c0_i32_0 : i32, i32
  }
}

</mosaic_0001>

<llo_original>
// kernel: tpu_custom_call.1
$region0: #{tpu_custom_call.1}
  #allocation0 [shape = 'u32[]', space=smem, size = 0x4, offset = 0x4, fixed_abs, tag = 'smem constant byte address 0x4 - core index']
  #allocation1 [shape = 'u32[144,128]{1,0:T(1,128)}', space=vmem, size = 0x12000, scoped, tag = 'internal scratch']
  #allocation2 [shape = 'f32[8,1]{1,0:T(8,128)}', space=vmem, size = 0x1000, scoped, tag = 'scratch operand']
  %s0 = inlined_call_operand.vmem [shape: f32[8,16], index: 0, kind: input, shape index: {}]
  %s1 = inlined_call_operand.vmem [shape: s32[8,1], index: 1, kind: input, shape index: {}]
  %s2 = inlined_call_operand.hbm [shape: f32[1,1], index: 2, kind: output, shape index: {}]
  %s3 = sld [smem:[#allocation0]]
  $region26: #{tpu_custom_call.1} parent=0
    _
  %s5 = ssub.s32 1, %s3
  %s6 = scalar_select 0, %s5, %s3
  $region1: #{tpu_custom_call.1} parent=0
    #allocation3 [shape = 'u8[512]{0}', space=vmem, size = 0x400, scoped, tag = 'output window, operand 0, single buffered']
    #allocation4 [shape = 's32[1]{0}', space=sflag, size = 0x4, scoped, tag = 'scoped memory for tpu_custom_call.1']
    %7 = vsyncpa [#allocation4], 0
    // Predicated region
    $region2: #{tpu_custom_call.1} parent=1 // pred_check
      _
    $region3: #{tpu_custom_call.1} parent=1 // pred_check_branch
      %9 = sbr.rel (0) target = $region5
    $region4: #{tpu_custom_call.1} parent=1 // pred_region
      _
    $region5: #{tpu_custom_call.1} parent=1 // pred_fallthru
      _
    // Predicated region
    $region6: #{tpu_custom_call.1} parent=1 // pred_check
      _
    $region7: #{tpu_custom_call.1} parent=1 // pred_check_branch
      %11 = sbr.rel (0) target = $region9
    $region8: #{tpu_custom_call.1} parent=1 // pred_region
      _
    $region9: #{tpu_custom_call.1} parent=1 // pred_fallthru
      _
    %p12 = scmp.eq.s32.totalorder 0, 0
    // Predicated region
    $region10: #{tpu_custom_call.1} parent=1 // pred_check
      %p13 = pneg %p12
    $region11: #{tpu_custom_call.1} parent=1 // pred_check_branch
      %15 = sbr.rel (%p13) target = $region13
    $region12: #{tpu_custom_call.1} parent=1 // pred_region
      %vm16 = vcmask 7168
      %17 = vst.msk [vmem:[#allocation2] sm:$0xff] %vm16, 0.0
    $region13: #{tpu_custom_call.1} parent=1 // pred_fallthru
      _
    %v18 = vld [vmem:[%s0] sm:$0xff]
    %v19 = vld [vmem:[%s1] sm:$0xff]
    %v20 = vlaneseq
    %v21 = vand.u32 %v20, 127
    %22 = vset.pattern.permute.xlu0 0
    %23 = vperm.xlu0 %22, %v19
    %v24 = vpop.permute.xlu0 %23
    %vm25 = vcmp.eq.s32.totalorder %v21, %v24
    %v26 = vsel %vm25, %v18, 0.0
    %vm27 = vcmask 130048
    %v28 = vsel %vm27, %v26, 0.0
    %29 = vadd.xlane.f32.xlu0 %v28
    %v30 = vpop.xlane.xlu0 %29
    %v31 = vsel %vm27, %v18, -inf
    %32 = vmax.xlane.f32.xlu0 %v31
    %v33 = vpop.xlane.xlu0 %32
    %v34 = vsub.f32 %v18, %v33
    %v35 = vmul.f32 %v34, 1.442695
    %v36 = vpow.pop %v35
    %v37 = vsel %vm27, %v36, 0.0
    %38 = vadd.xlane.f32.xlu0 %v37
    %v39 = vpop.xlane.xlu0 %38
    %v40 = vsel %vm25, %v36, 0.0
    %v41 = vsel %vm27, %v40, 0.0
    %42 = vadd.xlane.f32.xlu0 %v41
    %v43 = vpop.xlane.xlu0 %42
    %v44 = vlog2.pop %v39
    %v45 = vmul.f32 %v44, 0.6931472
    %v46 = vsub.f32 %v30, %v33
    %v47 = vsub.f32 %v45, %v46
    %v48 = vmax.f32 %v47, 0.0
    %v49 = vrcp.pop %v39
    %v50 = vmul.f32 %v43, %v49
    %v51 = vsub.f32 1.0, %v50
    %v52 = vmax.f32 %v51, 0.0
    %v53 = vmul.f32 %v52, %v52
    %v54 = vmul.f32 %v53, %v52
    %v55 = vmul.f32 %v54, %v48
    %v56 = vld [vmem:[#allocation2] sm:$0xff]
    %v57 = vadd.f32 %v56, %v55
    %vm58 = vcmask 7168
    %59 = vst.msk [vmem:[#allocation2] sm:$0xff] %vm58, %v57
    // Predicated region
    $region14: #{tpu_custom_call.1} parent=1 // pred_check
      %p60 = pneg %p12
    $region15: #{tpu_custom_call.1} parent=1 // pred_check_branch
      %62 = sbr.rel (%p60) target = $region17
    $region16: #{tpu_custom_call.1} parent=1 // pred_region
      %v63 = vld [vmem:[#allocation2] sm:$0xff]
      %v64 = vsel %vm58, %v63, 0.0
      %65 = vadd.xlane.f32.xlu0 %v64
      %v66 = vpop.xlane.xlu0 %65
      %v67 = vrot.slane %v66, 4
      %v68 = vadd.f32 %v66, %v67
      %v69 = vrot.slane %v68, 2
      %v70 = vadd.f32 %v68, %v69
      %v71 = vrot.slane %v70, 1
      %v72 = vadd.f32 %v70, %v71
      %s73 = vtos %v72
      %v74 = vstv %s73
      %vm75 = vcmask 0
      %76 = vst.msk [vmem:[#allocation3] sm:$0x1] %vm75, %v74
    $region17: #{tpu_custom_call.1} parent=1 // pred_fallthru
      _
    // Predicated region
    $region18: #{tpu_custom_call.1} parent=1 // pred_check
      _
    $region19: #{tpu_custom_call.1} parent=1 // pred_check_branch
      %78 = sbr.rel (0) target = $region21
    $region20: #{tpu_custom_call.1} parent=1 // pred_region
      %s80 = ssub.s32 16, 16
      %81 = vsyncadd [#allocation4], %s80
      %s83 = sshll.u32 [#allocation3], 4
      %s84 = int_to_ptr.vmem [resolvable:$true] %s83
      %86 = dma.vmem_to_hbm [thread:$0]  %s84, 16, %s2, [#allocation4]
    $region21: #{tpu_custom_call.1} parent=1 // pred_fallthru
      _
    // Predicated region
    $region22: #{tpu_custom_call.1} parent=1 // pred_check
      _
    $region23: #{tpu_custom_call.1} parent=1 // pred_check_branch
      %88 = sbr.rel (0) target = $region25
    $region24: #{tpu_custom_call.1} parent=1 // pred_region
      %89 = dma.done [#allocation4], 16
    $region25: #{tpu_custom_call.1} parent=1 // pred_fallthru
      _
    %90 = vsyncpa [#allocation4], 1

</llo_original>
